<compile_context>
chip_gen: v6e
topology: v6e:2x2x1
jax: 0.10.0
libtpu: 0.0.40
codegen_flags: <defaults>
</compile_context>

<pallas_src>
import numpy as np
import jax
import jax.numpy as jnp
from jax.experimental import pallas as pl
from jax.experimental.pallas import tpu as pltpu


def _round_up(x, m):
    return ((x + m - 1) // m) * m


# ---------------------------------------------------------------------------
# Kernel: one (B, tile_n) output tile per grid step.
#   task: (B, D)   resident across all tiles (same block every step)
#   w   : (D, TN)  streamed tile of the fused, pre-transposed weight
#   b   : (1, TN)  streamed tile of the fused bias
#   out : (B, TN)  lane-dense store
# ---------------------------------------------------------------------------
def _fused_gate_kernel(task_ref, w_ref, b_ref, out_ref):
    acc = jnp.dot(task_ref[...], w_ref[...], preferred_element_type=jnp.float32)
    out_ref[...] = jax.nn.sigmoid(acc + b_ref[...])


def fused_gates(task, w_cat, b_cat, tile_n, interpret=False):
    """gates = sigmoid(task @ w_cat + b_cat), tiled over the fused output axis."""
    B, D = task.shape
    _, T_pad = w_cat.shape
    assert T_pad % tile_n == 0
    grid = (T_pad // tile_n,)

    return pl.pallas_call(
        _fused_gate_kernel,
        out_shape=jax.ShapeDtypeStruct((B, T_pad), jnp.float32),
        grid=grid,
        in_specs=[
            pl.BlockSpec((B, D), lambda j: (0, 0)),        # task: resident
            pl.BlockSpec((D, tile_n), lambda j: (0, j)),   # weight tile
            pl.BlockSpec((1, tile_n), lambda j: (0, j)),   # bias tile
        ],
        out_specs=pl.BlockSpec((B, tile_n), lambda j: (0, j)),
        compiler_params=pltpu.CompilerParams(
            dimension_semantics=("parallel",)),            # v7x: 2 TCs split tiles
        cost_estimate=pl.CostEstimate(
            flops=2 * B * D * T_pad,
            transcendentals=B * T_pad,
            bytes_accessed=4 * (B * D + D * T_pad + T_pad + B * T_pad)),
        interpret=interpret,
    )(task, w_cat, b_cat)


# ---------------------------------------------------------------------------
# Module wrapper: precomputes fused weights once, jits forward + dict split.
# ---------------------------------------------------------------------------
class ModulationNetworkTPU:
    """weights[p]: (total_dim_p, D) torch-Linear layout; biases[p]: (total_dim_p,)."""

    def __init__(self, parameter_list, weights, biases, tile_n=512):
        self.parameter_list = list(parameter_list)
        self.sizes = [int(weights[p].shape[0]) for p in self.parameter_list]
        T = sum(self.sizes)
        D = int(weights[self.parameter_list[0]].shape[1])

        # Pick a lane-dense tile (multiple of 128); pad fused axis to a multiple of it.
        t128 = _round_up(T, 128)
        self.tile_n = tile_n if t128 >= tile_n else t128
        T_pad = _round_up(T, self.tile_n)
        self.T, self.T_pad, self.D = T, T_pad, D

        # Hoisted (done ONCE): concat -> zero-pad -> transpose to (D, T_pad).
        w_cat = jnp.concatenate(
            [weights[p].astype(jnp.float32) for p in self.parameter_list], axis=0)  # (T, D)
        b_cat = jnp.concatenate(
            [biases[p].astype(jnp.float32) for p in self.parameter_list], axis=0)   # (T,)
        self.w_cat = jnp.pad(w_cat, ((0, T_pad - T), (0, 0))).T            # (D, T_pad)
        self.b_cat = jnp.pad(b_cat, (0, T_pad - T)).reshape(1, T_pad)      # (1, T_pad)

        self._fwd = jax.jit(self._forward)

    def _forward(self, task_repre, w_cat, b_cat):
        squeeze = task_repre.ndim == 1
        task = (task_repre.reshape(1, -1) if squeeze else task_repre).astype(jnp.float32)
        gates = fused_gates(task, w_cat, b_cat, self.tile_n)
        # Split back into the per-parameter dict (inside jit -> slices fuse, no
        # per-parameter dispatch).  Padded tail columns (sigmoid(0)=0.5) are dropped.
        out = {}
        off = 0
        for p, sz in zip(self.parameter_list, self.sizes):
            g = gates[:, off:off + sz]
            out[p] = g.reshape(sz) if squeeze else g
            off += sz
        return out

    def __call__(self, task_repre):
        return self._fwd(task_repre, self.w_cat, self.b_cat)


def modulation_reference(task_repre, parameter_list, weights, biases):
    """Pure-JAX reference mirroring the torch forward exactly."""
    squeeze = task_repre.ndim == 1
    task = (task_repre.reshape(1, -1) if squeeze else task_repre).astype(jnp.float32)
    out = {}
    for p in parameter_list:
        g = jax.nn.sigmoid(task @ weights[p].astype(jnp.float32).T
                           + biases[p].astype(jnp.float32))
        out[p] = g.reshape(-1) if squeeze else g
    return out


if __name__ == "__main__":
    # Toy base model (Linear(16->32) -> act -> Linear(32->8)), all parameters
    # modulated; embedding_dim = 32.  Fused T = 512+32+256+8 = 808 -> T_pad = 1024
    # -> grid of 2 tiles of 512 lanes (exercises the tiled/pipelined path).
    embedding_dim = 32
    base_model_shapes = {
        "net.0.weight": (32, 16),   # total_dim = 512
        "net.0.bias":   (32,),      # total_dim = 32
        "net.2.weight": (8, 32),    # total_dim = 256
        "net.2.bias":   (8,),       # total_dim = 8
    }
    parameter_list = list(base_model_shapes.keys())

    key = jax.random.PRNGKey(0)
    k_task, k_batch, *k_params = jax.random.split(key, 2 + 2 * len(parameter_list))

    # Single-task representation vector (as used by the meta-learner) and a small batch.
    task_repre = jax.random.normal(k_task, (embedding_dim,), dtype=jnp.float32)
    task_batch = jax.random.normal(k_batch, (2, embedding_dim), dtype=jnp.float32)

    # One Linear(embedding_dim -> total_dim_i) per modulated parameter.
    weights, biases = {}, {}
    for i, p in enumerate(parameter_list):
        total_dim = int(np.prod(base_model_shapes[p]))
        kw, kb = k_params[2 * i], k_params[2 * i + 1]
        bound = float(1.0 / np.sqrt(embedding_dim))  # torch.nn.Linear default init range
        weights[p] = jax.random.uniform(kw, (total_dim, embedding_dim),
                                        minval=-bound, maxval=bound, dtype=jnp.float32)
        biases[p] = jax.random.uniform(kb, (total_dim,),
                                       minval=-bound, maxval=bound, dtype=jnp.float32)

    mod_net = ModulationNetworkTPU(parameter_list, weights, biases, tile_n=512)

    # Vector task_repre (torch forward shape).
    gatings = jax.block_until_ready(mod_net(task_repre))
    ref = modulation_reference(task_repre, parameter_list, weights, biases)
    for p in parameter_list:
        np.testing.assert_allclose(np.asarray(gatings[p]), np.asarray(ref[p]),
                                   rtol=1e-5, atol=1e-5)

    # Batched task_repre (rows ride the same weight DMA nearly for free).
    gatings_b = jax.block_until_ready(mod_net(task_batch))
    ref_b = modulation_reference(task_batch, parameter_list, weights, biases)
    for p in parameter_list:
        np.testing.assert_allclose(np.asarray(gatings_b[p]), np.asarray(ref_b[p]),
                                   rtol=1e-5, atol=1e-5)

    print("KERNEL_OK")
</pallas_src>

<mosaic_0001>
module attributes {stable_mosaic.version = 11 : i64} {
  func.func @_fused_gate_kernel(%arg0: i32, %arg1: memref<1x32xf32, #tpu.memory_space<vmem>>, %arg2: memref<32x512xf32, #tpu.memory_space<vmem>>, %arg3: memref<1x512xf32, #tpu.memory_space<vmem>>, %arg4: memref<1x512xf32, #tpu.memory_space<vmem>>) attributes {dimension_semantics = [#tpu.dimension_semantics<parallel>], iteration_bounds = array<i64: 2>, scalar_prefetch = 0 : i64, scratch_operands = 0 : i64, tpu.core_type = #tpu.core_type<tc>, window_params = [{pipeline_mode = #tpu.pipeline_mode<synchronous>, transform_indices = @transform_0, window_bounds = array<i64: 1, 32>}, {transform_indices = @transform_1, window_bounds = array<i64: 32, 512>}, {transform_indices = @transform_2, window_bounds = array<i64: 1, 512>}, {transform_indices = @transform_3, window_bounds = array<i64: 1, 512>}]} {
    %c0 = arith.constant 0 : index
    %c0_0 = arith.constant 0 : index
    %0 = vector.load %arg1[%c0, %c0_0] : memref<1x32xf32, #tpu.memory_space<vmem>>, vector<1x32xf32>
    %c0_1 = arith.constant 0 : index
    %c0_2 = arith.constant 0 : index
    %1 = vector.load %arg2[%c0_1, %c0_2] : memref<32x512xf32, #tpu.memory_space<vmem>>, vector<32x512xf32>
    %cst = arith.constant dense<0.000000e+00> : vector<1x512xf32>
    %2 = tpu.matmul %0, %1, %cst {dimension_numbers = #tpu.dot_dimension_numbers<[1], [0], [0], [1], [0, 0, 1, 1], [], []>} : vector<1x32xf32>, vector<32x512xf32>, vector<1x512xf32> -> vector<1x512xf32>
    %c0_3 = arith.constant 0 : index
    %c0_4 = arith.constant 0 : index
    %3 = vector.load %arg3[%c0_3, %c0_4] : memref<1x512xf32, #tpu.memory_space<vmem>>, vector<1x512xf32>
    %4 = arith.addf %2, %3 : vector<1x512xf32>
    %5 = arith.negf %4 : vector<1x512xf32>
    %6 = math.exp %5 : vector<1x512xf32>
    %cst_5 = arith.constant 1.000000e+00 : f32
    %7 = vector.broadcast %cst_5 : f32 to vector<1x512xf32>
    %8 = arith.addf %7, %6 : vector<1x512xf32>
    %9 = arith.divf %7, %8 : vector<1x512xf32>
    %c0_6 = arith.constant 0 : index
    %c0_7 = arith.constant 0 : index
    %10 = vector.load %arg4[%c0_6, %c0_7] : memref<1x512xf32, #tpu.memory_space<vmem>>, vector<1x512xf32>
    tpu.vector_store %arg4[%c0_6, %c0_7], %9 {strides = array<i32>} : memref<1x512xf32, #tpu.memory_space<vmem>>, vector<1x512xf32>,
    return
  }
  func.func @transform_0(%arg0: i32) -> (i32, i32) {
    %c0_i32 = arith.constant 0 : i32
    %c0_i32_0 = arith.constant 0 : i32
    %c0_i32_1 = arith.constant 0 : i32
    return %c0_i32, %c0_i32_0 : i32, i32
  }
  func.func @transform_1(%arg0: i32) -> (i32, i32) {
    %c0_i32 = arith.constant 0 : i32
    %c0_i32_0 = arith.constant 0 : i32
    return %c0_i32, %arg0 : i32, i32
  }
  func.func @transform_2(%arg0: i32) -> (i32, i32) {
    %c0_i32 = arith.constant 0 : i32
    %c0_i32_0 = arith.constant 0 : i32
    return %c0_i32, %arg0 : i32, i32
  }
  func.func @transform_3(%arg0: i32) -> (i32, i32) {
    %c0_i32 = arith.constant 0 : i32
    %c0_i32_0 = arith.constant 0 : i32
    return %c0_i32, %arg0 : i32, i32
  }
}

</mosaic_0001>

<llo_original>
// kernel: _forward.1
$region0: #{_forward.1}
  #allocation0 [shape = 'u32[]', space=smem, size = 0x4, offset = 0x4, fixed_abs, tag = 'smem constant byte address 0x4 - core index']
  #allocation1 [shape = 'u32[144,128]{1,0:T(1,128)}', space=vmem, size = 0x12000, scoped, tag = 'internal scratch']
  %s0 = inlined_call_operand.vmem [shape: f32[1,32], index: 0, kind: input, shape index: {}]
  %s1 = inlined_call_operand.hbm [shape: f32[32,1024], index: 1, kind: input, shape index: {}]
  %s2 = inlined_call_operand.hbm [shape: f32[1,1024], index: 2, kind: input, shape index: {}]
  %s3 = inlined_call_operand.vmem [shape: f32[1,1024], index: 3, kind: output, shape index: {}]
  %s4 = sld [smem:[#allocation0]]
  $region53: #{_forward.1} parent=0
    _
  %s6 = ssub.s32 1, %s4
  %s7 = scalar_select 0, %s6, %s4
  $region1: #{_forward.1} parent=0
    #allocation2 [shape = 'u8[131072]{0}', space=vmem, size = 0x20000, scoped, tag = 'input window, operand 1']
    #allocation3 [shape = 's32[2]{0}', space=sflag, size = 0x8, scoped, tag = 'scoped memory for _forward.1']
    #allocation4 [shape = 'u8[4096]{0}', space=vmem, size = 0x1000, scoped, tag = 'input window, operand 2']
    #allocation5 [shape = 's32[2]{0}', space=sflag, size = 0x8, scoped, tag = 'scoped memory for _forward.1']
    %8 = vsyncpa [#allocation3], 0
    %s9 = scalar_lea.sflag [#allocation3], 1
    %10 = vsyncpa %s9, 0
    %11 = vsyncpa [#allocation5], 0
    %s12 = scalar_lea.sflag [#allocation5], 1
    %13 = vsyncpa %s12, 0
    loop: start=0, step=1, limit=4
    $region2: #{_forward.1} parent=1 // loop_pre_header
      _
    $region3: #{_forward.1} parent=1 // loop_header
      %s15 = sphi 0, %s19
      %p16 = scmp.ge.s32.totalorder %s15, 4
      %s23 = sphi 0, %s23
      %s25 = sphi 0, %s23
      %s26 = sphi 0, %s25
      %s40 = sphi 0, %s26
      %s46 = sphi 0, %s48
      %s49 = sphi 0, %s46
      %s50 = sphi 0, %s49
      %s66 = sphi 0, %s50
      %s72 = sphi 0, %s74
      %s75 = sphi 0, %s72
      %s76 = sphi 0, %s75
      %s92 = sphi 0, %s76
      %s98 = sphi 0, %s100
      %s101 = sphi 0, %s98
      %s102 = sphi 0, %s101
      %s118 = sphi 0, %s102
    $region4: #{_forward.1} parent=1 // loop_header_branch
      %18 = sbr.rel (%p16) target = $region8
    $region5: #{_forward.1} parent=1 // loop_body
      %s20 = ssub.s32 %s15, 1
      %s21 = ssub.s32 %s15, 2
      %s22 = sadd.s32 %s15, 1
      %s24 = sadd.s32 %s23, 1
      %p27 = scmp.eq.s32.totalorder %s15, 1
      %p28 = scmp.ne.s32.totalorder %s23, %s25
      %p29 = scmp.eq.s32.totalorder %s15, 0
      %p30 = por %p28, %p29
      %p31 = scmp.ne.s32.totalorder %s23, %s25
      %p32 = scmp.eq.s32.totalorder %s20, 1
      %p33 = por %p31, %p32
      %p34 = scmp.ne.s32.totalorder %s25, %s26
      %p35 = scmp.eq.s32.totalorder %s20, 0
      %p36 = por %p34, %p35
      %p37 = scmp.ne.s32.totalorder %s25, %s26
      %p38 = scmp.eq.s32.totalorder %s21, 1
      %p39 = por %p37, %p38
      %p41 = scmp.ne.s32.totalorder %s26, %s40
      %p42 = scmp.eq.s32.totalorder %s21, 0
      %p43 = por %p41, %p42
      %s44 = ssub.s32 %s15, %s22
      %p45 = scmp.eq.s32.totalorder %s44, 0
      %s47 = sadd.s32 %s46, 1
      %s48 = scalar_select %p45, %s46, %s47
      %p51 = pneg %p45
      %p52 = scmp.eq.s32.totalorder %s15, 1
      %p53 = por %p51, %p52
      %p54 = scmp.ne.s32.totalorder %s46, %s49
      %p55 = scmp.eq.s32.totalorder %s15, 0
      %p56 = por %p54, %p55
      %p57 = scmp.ne.s32.totalorder %s46, %s49
      %p58 = scmp.eq.s32.totalorder %s20, 1
      %p59 = por %p57, %p58
      %p60 = scmp.ne.s32.totalorder %s49, %s50
      %p61 = scmp.eq.s32.totalorder %s20, 0
      %p62 = por %p60, %p61
      %p63 = scmp.ne.s32.totalorder %s49, %s50
      %p64 = scmp.eq.s32.totalorder %s21, 1
      %p65 = por %p63, %p64
      %p67 = scmp.ne.s32.totalorder %s50, %s66
      %p68 = scmp.eq.s32.totalorder %s21, 0
      %p69 = por %p67, %p68
      %s70 = ssub.s32 %s15, %s22
      %p71 = scmp.eq.s32.totalorder %s70, 0
      %s73 = sadd.s32 %s72, 1
      %s74 = scalar_select %p71, %s72, %s73
      %p77 = pneg %p71
      %p78 = scmp.eq.s32.totalorder %s15, 1
      %p79 = por %p77, %p78
      %p80 = scmp.ne.s32.totalorder %s72, %s75
      %p81 = scmp.eq.s32.totalorder %s15, 0
      %p82 = por %p80, %p81
      %p83 = scmp.ne.s32.totalorder %s72, %s75
      %p84 = scmp.eq.s32.totalorder %s20, 1
      %p85 = por %p83, %p84
      %p86 = scmp.ne.s32.totalorder %s75, %s76
      %p87 = scmp.eq.s32.totalorder %s20, 0
      %p88 = por %p86, %p87
      %p89 = scmp.ne.s32.totalorder %s75, %s76
      %p90 = scmp.eq.s32.totalorder %s21, 1
      %p91 = por %p89, %p90
      %p93 = scmp.ne.s32.totalorder %s76, %s92
      %p94 = scmp.eq.s32.totalorder %s21, 0
      %p95 = por %p93, %p94
      %s96 = ssub.s32 %s15, %s22
      %p97 = scmp.eq.s32.totalorder %s96, 0
      %s99 = sadd.s32 %s98, 1
      %s100 = scalar_select %p97, %s98, %s99
      %p103 = pneg %p97
      %p104 = scmp.eq.s32.totalorder %s15, 1
      %p105 = por %p103, %p104
      %p106 = scmp.ne.s32.totalorder %s98, %s101
      %p107 = scmp.eq.s32.totalorder %s15, 0
      %p108 = por %p106, %p107
      %p109 = scmp.ne.s32.totalorder %s98, %s101
      %p110 = scmp.eq.s32.totalorder %s20, 1
      %p111 = por %p109, %p110
      %p112 = scmp.ne.s32.totalorder %s101, %s102
      %p113 = scmp.eq.s32.totalorder %s20, 0
      %p114 = por %p112, %p113
      %p115 = scmp.ne.s32.totalorder %s101, %s102
      %p116 = scmp.eq.s32.totalorder %s21, 1
      %p117 = por %p115, %p116
      %p119 = scmp.ne.s32.totalorder %s102, %s118
      %p120 = scmp.eq.s32.totalorder %s21, 0
      %p121 = por %p119, %p120
      %p122 = scmp.le.s32.totalorder 1, %s15
      %p123 = scmp.lt.s32.totalorder %s15, 3
      %p124 = pnand %p122, %p123
      %p125 = pneg %p124
      // Predicated region
      $region9: #{_forward.1} parent=5 // pred_check
        _
      $region10: #{_forward.1} parent=5 // pred_check_branch
        %127 = sbr.rel (%p124) target = $region12
      $region11: #{_forward.1} parent=5 // pred_region
        %s128 = ssub.s32 %s15, 1
        // Predicated region
        $region13: #{_forward.1} parent=11 // pred_check
          %p129 = pneg %p36
        $region14: #{_forward.1} parent=11 // pred_check_branch
          %131 = sbr.rel (%p129) target = $region16
        $region15: #{_forward.1} parent=11 // pred_region
          _
        $region16: #{_forward.1} parent=11 // pred_fallthru
          _
      $region12: #{_forward.1} parent=5 // pred_fallthru
        _
      %p132 = scmp.lt.s32.totalorder %s15, 2
      // Predicated region
      $region17: #{_forward.1} parent=5 // pred_check
        %p133 = pneg %p132
      $region18: #{_forward.1} parent=5 // pred_check_branch
        %135 = sbr.rel (%p133) target = $region20
      $region19: #{_forward.1} parent=5 // pred_region
        // Predicated region
        $region21: #{_forward.1} parent=19 // pred_check
          %p136 = pneg %p56
        $region22: #{_forward.1} parent=19 // pred_check_branch
          %138 = sbr.rel (%p136) target = $region24
        $region23: #{_forward.1} parent=19 // pred_region
          %s139 = sand.u32 %s46, 1
          %s140 = scalar_lea.sflag [#allocation3], %s139
          %s141 = sand.u32 %s46, 1
          %s142 = smul.addr %s141, 128
          %s143 = scalar_lea.vmem [#allocation2], %s142
          %s144 = smul.u32 4, %s15
          %s146 = ssub.s32 2048, 2048
          %147 = vsyncadd %s140, %s146
          %s148 = smul.addr %s144, 128
          %s149 = scalar_lea.hbm %s1, %s148
          %s150 = sshll.u32 %s143, 4
          %s151 = int_to_ptr.vmem [resolvable:$true] %s150
          %156 = dma.hbm_to_vmem [thread:$0]  %s149, 2048, %s151, %s140, 1024, 512, 32
        $region24: #{_forward.1} parent=19 // pred_fallthru
          _
        // Predicated region
        $region25: #{_forward.1} parent=19 // pred_check
          %p157 = pneg %p82
        $region26: #{_forward.1} parent=19 // pred_check_branch
          %159 = sbr.rel (%p157) target = $region28
        $region27: #{_forward.1} parent=19 // pred_region
          %s160 = sand.u32 %s72, 1
          %s161 = scalar_lea.sflag [#allocation5], %s160
          %s162 = sand.u32 %s72, 1
          %s163 = smul.addr %s162, 4
          %s164 = scalar_lea.vmem [#allocation4], %s163
          %s165 = smul.u32 4, %s15
          %s167 = ssub.s32 64, 64
          %168 = vsyncadd %s161, %s167
          %s169 = smul.addr %s165, 16
          %s170 = scalar_lea.hbm %s2, %s169
          %s172 = sshll.u32 %s164, 4
          %s173 = int_to_ptr.vmem [resolvable:$true] %s172
          %175 = dma.hbm_to_vmem [thread:$0]  %s170, 64, %s173, %s161
        $region28: #{_forward.1} parent=19 // pred_fallthru
          _
      $region20: #{_forward.1} parent=5 // pred_fallthru
        _
      %p176 = scmp.le.s32.totalorder 1, %s15
      %p177 = scmp.lt.s32.totalorder %s15, 3
      %p178 = pnand %p176, %p177
      %p179 = pneg %p178
      // Predicated region
      $region29: #{_forward.1} parent=5 // pred_check
        _
      $region30: #{_forward.1} parent=5 // pred_check_branch
        %181 = sbr.rel (%p178) target = $region32
      $region31: #{_forward.1} parent=5 // pred_region
        %s182 = ssub.s32 %s15, 1
        %s183 = sand.u32 %s49, 1
        %s184 = scalar_lea.sflag [#allocation3], %s183
        %s185 = sand.u32 %s49, 1
        %s186 = smul.addr %s185, 128
        %s187 = scalar_lea.vmem [#allocation2], %s186
        // Predicated region
        $region33: #{_forward.1} parent=31 // pred_check
          %p188 = pneg %p62
        $region34: #{_forward.1} parent=31 // pred_check_branch
          %190 = sbr.rel (%p188) target = $region36
        $region35: #{_forward.1} parent=31 // pred_region
          %191 = dma.done %s184, 2048
        $region36: #{_forward.1} parent=31 // pred_fallthru
          _
        %s192 = sand.u32 %s75, 1
        %s193 = scalar_lea.sflag [#allocation5], %s192
        %s194 = sand.u32 %s75, 1
        %s195 = smul.addr %s194, 4
        %s196 = scalar_lea.vmem [#allocation4], %s195
        // Predicated region
        $region37: #{_forward.1} parent=31 // pred_check
          %p197 = pneg %p88
        $region38: #{_forward.1} parent=31 // pred_check_branch
          %199 = sbr.rel (%p197) target = $region40
        $region39: #{_forward.1} parent=31 // pred_region
          %200 = dma.done %s193, 64
        $region40: #{_forward.1} parent=31 // pred_fallthru
          _
        %p201 = pneg %p36
        %p202 = pneg %p33
        %s203 = sand.u32 %s49, 1
        %s204 = scalar_lea.sflag [#allocation3], %s203
        %s205 = sand.u32 %s49, 1
        %s206 = smul.addr %s205, 128
        %s207 = scalar_lea.vmem [#allocation2], %s206
        %p208 = pneg %p62
        %p209 = pneg %p59
        %s210 = sand.u32 %s75, 1
        %s211 = scalar_lea.sflag [#allocation5], %s210
        %s212 = sand.u32 %s75, 1
        %s213 = smul.addr %s212, 4
        %s214 = scalar_lea.vmem [#allocation4], %s213
        %p215 = pneg %p88
        %p216 = pneg %p85
        %p217 = pneg %p114
        %p218 = pneg %p111
        %s219 = smul.u32 4, %s20
        %p220 = scmp.lt.s32.totalorder %s219, 7
        %s221 = scalar_select %p220, %s219, 7
        %s222 = scalar_lea.vmem %s3, %s221
        %s223 = smul.u32 4, %s20
        %s224 = smul.u32 4, %s20
        %s225 = smul.u32 4, %s20
        %p226 = scmp.lt.s32.totalorder %s225, 7
        %s227 = scalar_select %p226, %s225, 7
        %s228 = scalar_lea.vmem %s3, %s227
        %s229 = smul.u32 4, %s20
        %v230 = vld [vmem:[%s0] sm:$0x1]
        %v231 = vld [vmem:[%s187] sm:$0xff]
        %v232 = vld [vmem:[%s187 + $0x8] sm:$0xff]
        %v233 = vld [vmem:[%s187 + $0x10] sm:$0xff]
        %v234 = vld [vmem:[%s187 + $0x18] sm:$0xff]
        %v235 = vld [vmem:[%s187 + $0x20] sm:$0xff]
        %v236 = vld [vmem:[%s187 + $0x28] sm:$0xff]
        %v237 = vld [vmem:[%s187 + $0x30] sm:$0xff]
        %v238 = vld [vmem:[%s187 + $0x38] sm:$0xff]
        %v239 = vld [vmem:[%s187 + $0x40] sm:$0xff]
        %v240 = vld [vmem:[%s187 + $0x48] sm:$0xff]
        %v241 = vld [vmem:[%s187 + $0x50] sm:$0xff]
        %v242 = vld [vmem:[%s187 + $0x58] sm:$0xff]
        %v243 = vld [vmem:[%s187 + $0x60] sm:$0xff]
        %v244 = vld [vmem:[%s187 + $0x68] sm:$0xff]
        %v245 = vld [vmem:[%s187 + $0x70] sm:$0xff]
        %v246 = vld [vmem:[%s187 + $0x78] sm:$0xff]
        %v247 = vld [vmem:[%s196] sm:$0xf]
        %v249 = vlaneseq
        %v250 = vshrl.u32 %v249, 7
        %v251 = vsub.s32 0, %v250
        %v252 = vrot.slane %v247, %v251
        %v253 = vlaneseq
        %v254 = vshrl.u32 %v253, 7
        %v255 = vsub.s32 1, %v254
        %v256 = vrot.slane %v247, %v255
        %v257 = vlaneseq
        %v258 = vshrl.u32 %v257, 7
        %v259 = vsub.s32 2, %v258
        %v260 = vrot.slane %v247, %v259
        %v261 = vlaneseq
        %v262 = vshrl.u32 %v261, 7
        %v263 = vsub.s32 3, %v262
        %v264 = vrot.slane %v247, %v263
        %vm269 = vcmask 261120
        %v271 = vsel %vm269, %v230, 0
        %273 = vmatprep.subr.mxu0 0.0
        %274 = vmatpush1.msra.mxu0 0.0
        %275 = vmatprep.subr.mxu0 0.0
        %276 = vmatpush1.msra.mxu0 0.0
        %277 = vmatprep.subr.mxu0 0.0
        %278 = vmatpush1.msra.mxu0 0.0
        %279 = vmatprep.subr.mxu0 0.0
        %280 = vmatpush1.msra.mxu0 0.0
        %281 = vmatprep.subr.mxu0 0.0
        %282 = vmatpush1.msra.mxu0 0.0
        %283 = vmatprep.subr.mxu0 0.0
        %284 = vmatpush1.msra.mxu0 0.0
        %285 = vmatprep.subr.mxu0 0.0
        %286 = vmatpush1.msra.mxu0 0.0
        %287 = vmatprep.subr.mxu0 0.0
        %288 = vmatpush1.msra.mxu0 0.0
        %289 = vmatprep.subr.mxu0 0.0
        %290 = vmatpush1.msra.mxu0 0.0
        %291 = vmatprep.subr.mxu0 0.0
        %292 = vmatpush1.msra.mxu0 0.0
        %293 = vmatprep.subr.mxu0 0.0
        %294 = vmatpush1.msra.mxu0 0.0
        %295 = vmatprep.subr.mxu0 0.0
        %296 = vmatpush1.msra.mxu0 0.0
        %297 = vmatprep.subr.mxu0 %v244
        %298 = vmatpush1.msra.mxu0 %v243
        %299 = vmatprep.subr.mxu0 %v240
        %300 = vmatpush1.msra.mxu0 %v239
        %301 = vmatprep.subr.mxu0 %v236
        %302 = vmatpush1.msra.mxu0 %v235
        %303 = vmatprep.subr.mxu0 %v232
        %304 = vmatpush1.msra.mxu0 %v231
        %305 = vmatprep.subr.mxu0 0.0
        %306 = vmatpush2.msra.mxu0 0.0
        %307 = vmatprep.subr.mxu0 0.0
        %308 = vmatpush2.msra.mxu0 0.0
        %309 = vmatprep.subr.mxu0 0.0
        %310 = vmatpush2.msra.mxu0 0.0
        %311 = vmatprep.subr.mxu0 0.0
        %312 = vmatpush2.msra.mxu0 0.0
        %313 = vmatprep.subr.mxu0 0.0
        %314 = vmatpush2.msra.mxu0 0.0
        %315 = vmatprep.subr.mxu0 0.0
        %316 = vmatpush2.msra.mxu0 0.0
        %317 = vmatprep.subr.mxu0 0.0
        %318 = vmatpush2.msra.mxu0 0.0
        %319 = vmatprep.subr.mxu0 0.0
        %320 = vmatpush2.msra.mxu0 0.0
        %321 = vmatprep.subr.mxu0 0.0
        %322 = vmatpush2.msra.mxu0 0.0
        %323 = vmatprep.subr.mxu0 0.0
        %324 = vmatpush2.msra.mxu0 0.0
        %325 = vmatprep.subr.mxu0 0.0
        %326 = vmatpush2.msra.mxu0 0.0
        %327 = vmatprep.subr.mxu0 0.0
        %328 = vmatpush2.msra.mxu0 0.0
        %329 = vmatprep.subr.mxu0 0.0
        %330 = vmatpush2.msra.mxu0 0.0
        %331 = vmatprep.subr.mxu0 0.0
        %332 = vmatpush2.msra.mxu0 0.0
        %333 = vmatprep.subr.mxu0 0.0
        %334 = vmatpush2.msra.mxu0 0.0
        %335 = vmatprep.subr.mxu0 0.0
        %336 = vmatpush2.msra.mxu0 0.0
        %337 = vmatprep.mubr.f32.mxu0 0.0
        %338 = vmatmul.mubr.f32.gmra.mxu0 %v271
        %v339 = vpop.f32.mrf.mxu0
        %v340 = vadd.f32 %v252, %v339
        %v341 = vpop.f32.mrf.mxu0
        %v342 = vadd.f32 %v256, %v341
        %343 = vdwg.mxu0
        %344 = vmatprep.subr.mxu0 0.0
        %345 = vmatpush1.msra.mxu0 0.0
        %346 = vmatprep.subr.mxu0 0.0
        %347 = vmatpush1.msra.mxu0 0.0
        %348 = vmatprep.subr.mxu0 0.0
        %349 = vmatpush1.msra.mxu0 0.0
        %350 = vmatprep.subr.mxu0 0.0
        %351 = vmatpush1.msra.mxu0 0.0
        %352 = vmatprep.subr.mxu0 0.0
        %353 = vmatpush1.msra.mxu0 0.0
        %354 = vmatprep.subr.mxu0 0.0
        %355 = vmatpush1.msra.mxu0 0.0
        %356 = vmatprep.subr.mxu0 0.0
        %357 = vmatpush1.msra.mxu0 0.0
        %358 = vmatprep.subr.mxu0 0.0
        %359 = vmatpush1.msra.mxu0 0.0
        %360 = vmatprep.subr.mxu0 0.0
        %361 = vmatpush1.msra.mxu0 0.0
        %362 = vmatprep.subr.mxu0 0.0
        %363 = vmatpush1.msra.mxu0 0.0
        %364 = vmatprep.subr.mxu0 0.0
        %365 = vmatpush1.msra.mxu0 0.0
        %366 = vmatprep.subr.mxu0 0.0
        %367 = vmatpush1.msra.mxu0 0.0
        %368 = vmatprep.subr.mxu0 %v246
        %369 = vmatpush1.msra.mxu0 %v245
        %370 = vmatprep.subr.mxu0 %v242
        %371 = vmatpush1.msra.mxu0 %v241
        %372 = vmatprep.subr.mxu0 %v238
        %373 = vmatpush1.msra.mxu0 %v237
        %374 = vmatprep.subr.mxu0 %v234
        %375 = vmatpush1.msra.mxu0 %v233
        %376 = vmatprep.subr.mxu0 0.0
        %377 = vmatpush2.msra.mxu0 0.0
        %378 = vmatprep.subr.mxu0 0.0
        %379 = vmatpush2.msra.mxu0 0.0
        %380 = vmatprep.subr.mxu0 0.0
        %381 = vmatpush2.msra.mxu0 0.0
        %382 = vmatprep.subr.mxu0 0.0
        %383 = vmatpush2.msra.mxu0 0.0
        %384 = vmatprep.subr.mxu0 0.0
        %385 = vmatpush2.msra.mxu0 0.0
        %386 = vmatprep.subr.mxu0 0.0
        %387 = vmatpush2.msra.mxu0 0.0
        %388 = vmatprep.subr.mxu0 0.0
        %389 = vmatpush2.msra.mxu0 0.0
        %390 = vmatprep.subr.mxu0 0.0
        %391 = vmatpush2.msra.mxu0 0.0
        %392 = vmatprep.subr.mxu0 0.0
        %393 = vmatpush2.msra.mxu0 0.0
        %394 = vmatprep.subr.mxu0 0.0
        %395 = vmatpush2.msra.mxu0 0.0
        %396 = vmatprep.subr.mxu0 0.0
        %397 = vmatpush2.msra.mxu0 0.0
        %398 = vmatprep.subr.mxu0 0.0
        %399 = vmatpush2.msra.mxu0 0.0
        %400 = vmatprep.subr.mxu0 0.0
        %401 = vmatpush2.msra.mxu0 0.0
        %402 = vmatprep.subr.mxu0 0.0
        %403 = vmatpush2.msra.mxu0 0.0
        %404 = vmatprep.subr.mxu0 0.0
        %405 = vmatpush2.msra.mxu0 0.0
        %406 = vmatprep.subr.mxu0 0.0
        %407 = vmatpush2.msra.mxu0 0.0
        %408 = vmatprep.mubr.f32.mxu0 0.0
        %409 = vmatmul.mubr.f32.gmra.mxu0 %v271
        %v410 = vpop.f32.mrf.mxu0
        %v411 = vadd.f32 %v260, %v410
        %v412 = vpop.f32.mrf.mxu0
        %v413 = vadd.f32 %v264, %v412
        %414 = vdwg.mxu0
        %v415 = vxor.u32 %v340, 2147483648
        %v416 = vxor.u32 %v342, 2147483648
        %v417 = vxor.u32 %v411, 2147483648
        %v418 = vxor.u32 %v413, 2147483648
        %v419 = vmul.f32 %v415, 1.442695
        %v420 = vpow.pop %v419
        %v421 = vmul.f32 %v416, 1.442695
        %v422 = vpow.pop %v421
        %v423 = vmul.f32 %v417, 1.442695
        %v424 = vpow.pop %v423
        %v425 = vmul.f32 %v418, 1.442695
        %v426 = vpow.pop %v425
        %v427 = vadd.f32 %v420, 1.0
        %v428 = vadd.f32 %v422, 1.0
        %v429 = vadd.f32 %v424, 1.0
        %v430 = vadd.f32 %v426, 1.0
        %v431 = vrcp.pop %v427
        %v432 = vmul.f32 1.0, %v431
        %v433 = vrcp.pop %v428
        %v434 = vmul.f32 1.0, %v433
        %v435 = vrcp.pop %v429
        %v436 = vmul.f32 1.0, %v435
        %v437 = vrcp.pop %v430
        %v438 = vmul.f32 1.0, %v437
        %v443 = vcombine.low %v432, %v434
        %v444 = vcombine.low %v436, %v438
        %v446 = vunpack.c.l.s4 1966171168
        %v447 = vunpack.c.0.s8 %v446
        %v448 = vlaneseq
        %v449 = vshrl.u32 %v448, 7
        %v450 = vsub.s32 %v447, %v449
        %v451 = vrot.slane %v443, %v450
        %v453 = vunpack.c.l.s4 1966171168
        %v454 = vunpack.c.0.s8 %v453
        %v455 = vlaneseq
        %v456 = vshrl.u32 %v455, 7
        %v457 = vsub.s32 %v454, %v456
        %v458 = vrot.slane %v444, %v457
        %v459 = vcombine.low %v451, %v458
        %v461 = vunpack.c.l.s4 1966171168
        %v462 = vunpack.c.0.s8 %v461
        %v463 = vlaneseq
        %v464 = vshrl.u32 %v463, 7
        %v465 = vsub.s32 %v462, %v464
        %v466 = vrot.slane %v459, %v465
        %v468 = vlaneseq
        %vm469 = vcmp.ge.s32.totalorder %v468, 0
        %vm470 = vcmp.lt.s32.totalorder %v468, 512
        %vm471 = vmand %vm469, %vm470
        %472 = vst.msk [vmem:[%s228] sm:$0xf] %vm471, %v466
        %s473 = smul.u32 4, %s20
        %p474 = scmp.lt.s32.totalorder %s473, 7
        %s475 = scalar_select %p474, %s473, 7
        %s476 = scalar_lea.vmem %s3, %s475
        // Predicated region
        $region41: #{_forward.1} parent=31 // pred_check
          %p477 = pneg %p111
        $region42: #{_forward.1} parent=31 // pred_check_branch
          %479 = sbr.rel (%p477) target = $region44
        $region43: #{_forward.1} parent=31 // pred_region
          %s480 = smul.u32 4, %s20
        $region44: #{_forward.1} parent=31 // pred_fallthru
          _
      $region32: #{_forward.1} parent=5 // pred_fallthru
        _
      %p481 = scmp.le.s32.totalorder 2, %s15
      // Predicated region
      $region45: #{_forward.1} parent=5 // pred_check
        %p482 = pneg %p481
      $region46: #{_forward.1} parent=5 // pred_check_branch
        %484 = sbr.rel (%p482) target = $region48
      $region47: #{_forward.1} parent=5 // pred_region
        %s485 = ssub.s32 %s15, 2
        // Predicated region
        $region49: #{_forward.1} parent=47 // pred_check
          %p486 = pneg %p117
        $region50: #{_forward.1} parent=47 // pred_check_branch
          %488 = sbr.rel (%p486) target = $region52
        $region51: #{_forward.1} parent=47 // pred_region
          %s489 = smul.u32 4, %s21
          %p490 = scmp.lt.s32.totalorder %s489, 7
          %s491 = scalar_select %p490, %s489, 7
          %s492 = scalar_lea.vmem %s3, %s491
        $region52: #{_forward.1} parent=47 // pred_fallthru
          _
      $region48: #{_forward.1} parent=5 // pred_fallthru
        _
    $region6: #{_forward.1} parent=1 // loop_footer
      %s19 = sadd.s32 1, %s15
    $region7: #{_forward.1} parent=1 // loop_footer_branch
      %14 = sbr.rel target = $region3
    $region8: #{_forward.1} parent=1 // loop_exit
      _
    %493 = vsyncpa [#allocation3], 1
    %s494 = scalar_lea.sflag [#allocation3], 1
    %495 = vsyncpa %s494, 1
    %496 = vsyncpa [#allocation5], 1
    %s497 = scalar_lea.sflag [#allocation5], 1
    %498 = vsyncpa %s497, 1

</llo_original>
